<compile_context>
chip_gen: v6e
topology: v6e:2x2x1
jax: 0.10.0
libtpu: 0.0.40
codegen_flags: <defaults>
</compile_context>

<pallas_src>
import functools

import jax
import jax.numpy as jnp
from jax.experimental import pallas as pl
from jax.experimental.pallas import tpu as pltpu

STATE_DIM = 14        # GNN node_output_dim in DQNAgent.get_state
HIDDEN = 32
NUM_ACTIONS = 10
DEFAULT_TB = 512      # batch tile (rows) — overhead-bound kernel, so go big
MAX_TB = 1024
MIN_PALLAS_BATCH = 16  # below this, a fused XLA dot chain is lower latency


def _round_up(n, m):
    return ((n + m - 1) // m) * m


def _cdiv(a, b):
    return (a + b - 1) // b


def dqn_mlp_kernel(x_ref, w1_ref, b1_ref, w2_ref, b2_ref, w3_ref, b3_ref, o_ref):
    """Whole 3-layer MLP for one batch tile.

    x_ref: (tb, 14) io_dtype; weights/biases: full (unpadded) arrays, resident
    in VMEM across grid steps (constant index_maps); o_ref: (tb, 10) f32.
    Dots accumulate in f32; ReLU / bias adds stay f32 (v5e-safe even with bf16
    weight storage)."""
    x = x_ref[...]
    h1 = jnp.maximum(
        jnp.dot(x, w1_ref[...], preferred_element_type=jnp.float32)
        + b1_ref[...].astype(jnp.float32), 0.0)
    h2 = jnp.maximum(
        jnp.dot(h1.astype(w2_ref.dtype), w2_ref[...],
                preferred_element_type=jnp.float32)
        + b2_ref[...].astype(jnp.float32), 0.0)
    q = (jnp.dot(h2.astype(w3_ref.dtype), w3_ref[...],
                 preferred_element_type=jnp.float32)
         + b3_ref[...].astype(jnp.float32))
    o_ref[...] = q.astype(o_ref.dtype)


def reference_forward(x, params):
    """Pure-JAX reference (also the small-batch XLA fast path)."""
    w1, b1, w2, b2, w3, b3 = params
    h1 = jnp.maximum(x @ w1 + b1, 0.0)
    h2 = jnp.maximum(h1 @ w2 + b2, 0.0)
    return h2 @ w3 + b3


@functools.partial(jax.jit, static_argnames=("block_b", "io_dtype", "force_pallas"))
def dqn_forward(x, params, *, block_b=DEFAULT_TB, io_dtype=jnp.float32,
                force_pallas=False):
    """Forward pass of DQNAgent (== main_network(x)) as a single Pallas kernel."""
    B = x.shape[0]

    # Small-batch fast path: fixed pallas_call overhead dominates; use fused XLA.
    if B < MIN_PALLAS_BATCH and not force_pallas:
        return reference_forward(x.astype(jnp.float32), params)

    w1, b1, w2, b2, w3, b3 = (p.astype(io_dtype) for p in params)
    x_io = x.astype(io_dtype)

    # Waste-minimizing, sublane-aligned batch tile.
    tb_cap = max(8, _round_up(min(int(block_b), MAX_TB), 8))
    n_steps = _cdiv(B, tb_cap)
    tb = _round_up(_cdiv(B, n_steps), 8)
    b_pad = n_steps * tb
    if b_pad > B:                       # pad only the 14 real columns (tiny)
        x_io = jnp.pad(x_io, ((0, b_pad - B), (0, 0)))

    io_bytes = jnp.dtype(io_dtype).itemsize
    n_param = (STATE_DIM * HIDDEN + HIDDEN + HIDDEN * HIDDEN + HIDDEN
               + HIDDEN * NUM_ACTIONS + NUM_ACTIONS)
    cost = pl.CostEstimate(
        flops=2 * b_pad * (STATE_DIM * HIDDEN + HIDDEN * HIDDEN
                           + HIDDEN * NUM_ACTIONS),
        transcendentals=0,
        bytes_accessed=(b_pad * STATE_DIM * io_bytes      # x in
                        + b_pad * NUM_ACTIONS * 4         # q out (f32)
                        + n_param * io_bytes),            # resident weights
    )

    const2 = lambda i: (0, 0)
    q_pad = pl.pallas_call(
        dqn_mlp_kernel,
        out_shape=jax.ShapeDtypeStruct((b_pad, NUM_ACTIONS), jnp.float32),
        grid_spec=pltpu.PrefetchScalarGridSpec(
            num_scalar_prefetch=0,
            grid=(n_steps,),
            in_specs=[
                pl.BlockSpec((tb, STATE_DIM), lambda i: (i, 0)),     # x tile
                pl.BlockSpec((STATE_DIM, HIDDEN), const2),           # w1
                pl.BlockSpec((1, HIDDEN), const2),                   # b1
                pl.BlockSpec((HIDDEN, HIDDEN), const2),              # w2
                pl.BlockSpec((1, HIDDEN), const2),                   # b2
                pl.BlockSpec((HIDDEN, NUM_ACTIONS), const2),         # w3
                pl.BlockSpec((1, NUM_ACTIONS), const2),              # b3
            ],
            out_specs=pl.BlockSpec((tb, NUM_ACTIONS), lambda i: (i, 0)),
        ),
        compiler_params=pltpu.CompilerParams(
            # Batch axis is independent per step; pipelines the x DMA and lets
            # megacore shard it.  (v7x-only follow-up: pltpu.CORE_PARALLEL.)
            dimension_semantics=("parallel",),
        ),
        cost_estimate=cost,
    )(x_io, w1, b1, w2, b2, w3, b3)

    return q_pad[:B] if b_pad > B else q_pad


def init_params(key):
    """Deterministic synthetic parameter init (shapes match the MLP above)."""
    k1, k2, k3 = jax.random.split(key, 3)
    w1 = jax.random.normal(k1, (STATE_DIM, HIDDEN), jnp.float32) * 0.1
    b1 = jnp.zeros((1, HIDDEN), jnp.float32)
    w2 = jax.random.normal(k2, (HIDDEN, HIDDEN), jnp.float32) * 0.1
    b2 = jnp.zeros((1, HIDDEN), jnp.float32)
    w3 = jax.random.normal(k3, (HIDDEN, NUM_ACTIONS), jnp.float32) * 0.1
    b3 = jnp.zeros((1, NUM_ACTIONS), jnp.float32)
    return (w1, b1, w2, b2, w3, b3)


if __name__ == "__main__":
    key = jax.random.PRNGKey(0)
    kx, kp = jax.random.split(key)
    params = init_params(kp)

    # Small inference-style batch (how DQNAgent.forward is called per env step).
    x_small = jax.random.normal(kx, (2, STATE_DIM), jnp.float32)
    ref_small = reference_forward(x_small, params)

    # Exercise the Pallas kernel at the small shape.
    q_small = jax.block_until_ready(dqn_forward(x_small, params, force_pallas=True))
    assert q_small.shape == (2, NUM_ACTIONS)
    assert jnp.allclose(q_small, ref_small, atol=1e-4, rtol=1e-4)

    # Default dispatch: B=2 < 16 takes the fused-XLA fast path; must agree.
    q_fast = jax.block_until_ready(dqn_forward(x_small, params))
    assert jnp.allclose(q_fast, ref_small, atol=1e-4, rtol=1e-4)

    # Non-multiple-of-8 batch: single grid step, tb=304 (4% pad waste, not 28%).
    x_med = jax.random.normal(jax.random.PRNGKey(1), (300, STATE_DIM), jnp.float32)
    q_med = jax.block_until_ready(dqn_forward(x_med, params))
    assert q_med.shape == (300, NUM_ACTIONS)
    assert jnp.allclose(q_med, reference_forward(x_med, params), atol=1e-4, rtol=1e-4)

    # Large replay-style batch: 4 grid steps of tb=512, weights stay resident.
    x_big = jax.random.normal(jax.random.PRNGKey(2), (2048, STATE_DIM), jnp.float32)
    q_big = jax.block_until_ready(dqn_forward(x_big, params))
    assert q_big.shape == (2048, NUM_ACTIONS)
    assert jnp.allclose(q_big, reference_forward(x_big, params), atol=1e-4, rtol=1e-4)

    # bf16 I/O option (halves x/weight HBM bytes on v6e/v7x); accumulation is f32.
    q_bf16 = jax.block_until_ready(
        dqn_forward(x_med, params, io_dtype=jnp.bfloat16))
    assert q_bf16.shape == (300, NUM_ACTIONS)
    assert jnp.allclose(q_bf16, reference_forward(x_med, params),
                        atol=3e-2, rtol=3e-2)

    # TODO(synk): replay-memory sampling / Adam training step / target-network
    # sync (DQNAgent.train, update_target) are host-side RL bookkeeping, not
    # part of forward(); not implemented as kernels.
    print("KERNEL_OK")
</pallas_src>

<mosaic_0001>
module attributes {stable_mosaic.version = 11 : i64} {
  func.func @dqn_mlp_kernel(%arg0: i32, %arg1: memref<8x14xf32, #tpu.memory_space<vmem>>, %arg2: memref<14x32xf32, #tpu.memory_space<vmem>>, %arg3: memref<1x32xf32, #tpu.memory_space<vmem>>, %arg4: memref<32x32xf32, #tpu.memory_space<vmem>>, %arg5: memref<1x32xf32, #tpu.memory_space<vmem>>, %arg6: memref<32x10xf32, #tpu.memory_space<vmem>>, %arg7: memref<1x10xf32, #tpu.memory_space<vmem>>, %arg8: memref<8x10xf32, #tpu.memory_space<vmem>>) attributes {dimension_semantics = [#tpu.dimension_semantics<parallel>], iteration_bounds = array<i64: 1>, scalar_prefetch = 0 : i64, scratch_operands = 0 : i64, tpu.core_type = #tpu.core_type<tc>, window_params = [{transform_indices = @transform_0, window_bounds = array<i64: 8, 14>}, {pipeline_mode = #tpu.pipeline_mode<synchronous>, transform_indices = @transform_1, window_bounds = array<i64: 14, 32>}, {pipeline_mode = #tpu.pipeline_mode<synchronous>, transform_indices = @transform_2, window_bounds = array<i64: 1, 32>}, {pipeline_mode = #tpu.pipeline_mode<synchronous>, transform_indices = @transform_3, window_bounds = array<i64: 32, 32>}, {pipeline_mode = #tpu.pipeline_mode<synchronous>, transform_indices = @transform_4, window_bounds = array<i64: 1, 32>}, {pipeline_mode = #tpu.pipeline_mode<synchronous>, transform_indices = @transform_5, window_bounds = array<i64: 32, 10>}, {pipeline_mode = #tpu.pipeline_mode<synchronous>, transform_indices = @transform_6, window_bounds = array<i64: 1, 10>}, {transform_indices = @transform_7, window_bounds = array<i64: 8, 10>}]} {
    %c0 = arith.constant 0 : index
    %c0_0 = arith.constant 0 : index
    %0 = vector.load %arg1[%c0, %c0_0] : memref<8x14xf32, #tpu.memory_space<vmem>>, vector<8x14xf32>
    %c0_1 = arith.constant 0 : index
    %c0_2 = arith.constant 0 : index
    %1 = vector.load %arg2[%c0_1, %c0_2] : memref<14x32xf32, #tpu.memory_space<vmem>>, vector<14x32xf32>
    %cst = arith.constant dense<0.000000e+00> : vector<8x32xf32>
    %2 = tpu.matmul %0, %1, %cst {dimension_numbers = #tpu.dot_dimension_numbers<[1], [0], [0], [1], [0, 0, 1, 1], [], []>} : vector<8x14xf32>, vector<14x32xf32>, vector<8x32xf32> -> vector<8x32xf32>
    %c0_3 = arith.constant 0 : index
    %c0_4 = arith.constant 0 : index
    %3 = vector.load %arg3[%c0_3, %c0_4] : memref<1x32xf32, #tpu.memory_space<vmem>>, vector<1x32xf32>
    %4 = vector.broadcast %3 : vector<1x32xf32> to vector<8x32xf32>
    %5 = arith.addf %2, %4 : vector<8x32xf32>
    %cst_5 = arith.constant 0.000000e+00 : f32
    %6 = vector.broadcast %cst_5 : f32 to vector<8x32xf32>
    %7 = arith.maximumf %5, %6 : vector<8x32xf32>
    %c0_6 = arith.constant 0 : index
    %c0_7 = arith.constant 0 : index
    %8 = vector.load %arg4[%c0_6, %c0_7] : memref<32x32xf32, #tpu.memory_space<vmem>>, vector<32x32xf32>
    %cst_8 = arith.constant dense<0.000000e+00> : vector<8x32xf32>
    %9 = tpu.matmul %7, %8, %cst_8 {dimension_numbers = #tpu.dot_dimension_numbers<[1], [0], [0], [1], [0, 0, 1, 1], [], []>} : vector<8x32xf32>, vector<32x32xf32>, vector<8x32xf32> -> vector<8x32xf32>
    %c0_9 = arith.constant 0 : index
    %c0_10 = arith.constant 0 : index
    %10 = vector.load %arg5[%c0_9, %c0_10] : memref<1x32xf32, #tpu.memory_space<vmem>>, vector<1x32xf32>
    %11 = vector.broadcast %10 : vector<1x32xf32> to vector<8x32xf32>
    %12 = arith.addf %9, %11 : vector<8x32xf32>
    %cst_11 = arith.constant 0.000000e+00 : f32
    %13 = vector.broadcast %cst_11 : f32 to vector<8x32xf32>
    %14 = arith.maximumf %12, %13 : vector<8x32xf32>
    %c0_12 = arith.constant 0 : index
    %c0_13 = arith.constant 0 : index
    %15 = vector.load %arg6[%c0_12, %c0_13] : memref<32x10xf32, #tpu.memory_space<vmem>>, vector<32x10xf32>
    %cst_14 = arith.constant dense<0.000000e+00> : vector<8x10xf32>
    %16 = tpu.matmul %14, %15, %cst_14 {dimension_numbers = #tpu.dot_dimension_numbers<[1], [0], [0], [1], [0, 0, 1, 1], [], []>} : vector<8x32xf32>, vector<32x10xf32>, vector<8x10xf32> -> vector<8x10xf32>
    %c0_15 = arith.constant 0 : index
    %c0_16 = arith.constant 0 : index
    %17 = vector.load %arg7[%c0_15, %c0_16] : memref<1x10xf32, #tpu.memory_space<vmem>>, vector<1x10xf32>
    %18 = vector.broadcast %17 : vector<1x10xf32> to vector<8x10xf32>
    %19 = arith.addf %16, %18 : vector<8x10xf32>
    %c0_17 = arith.constant 0 : index
    %c0_18 = arith.constant 0 : index
    %20 = vector.load %arg8[%c0_17, %c0_18] : memref<8x10xf32, #tpu.memory_space<vmem>>, vector<8x10xf32>
    tpu.vector_store %arg8[%c0_17, %c0_18], %19 {strides = array<i32>} : memref<8x10xf32, #tpu.memory_space<vmem>>, vector<8x10xf32>,
    return
  }
  func.func @transform_0(%arg0: i32) -> (i32, i32) {
    %c0_i32 = arith.constant 0 : i32
    %c0_i32_0 = arith.constant 0 : i32
    return %arg0, %c0_i32 : i32, i32
  }
  func.func @transform_1(%arg0: i32) -> (i32, i32) {
    %c0_i32 = arith.constant 0 : i32
    %c0_i32_0 = arith.constant 0 : i32
    %c0_i32_1 = arith.constant 0 : i32
    return %c0_i32, %c0_i32_0 : i32, i32
  }
  func.func @transform_2(%arg0: i32) -> (i32, i32) {
    %c0_i32 = arith.constant 0 : i32
    %c0_i32_0 = arith.constant 0 : i32
    %c0_i32_1 = arith.constant 0 : i32
    return %c0_i32, %c0_i32_0 : i32, i32
  }
  func.func @transform_3(%arg0: i32) -> (i32, i32) {
    %c0_i32 = arith.constant 0 : i32
    %c0_i32_0 = arith.constant 0 : i32
    %c0_i32_1 = arith.constant 0 : i32
    return %c0_i32, %c0_i32_0 : i32, i32
  }
  func.func @transform_4(%arg0: i32) -> (i32, i32) {
    %c0_i32 = arith.constant 0 : i32
    %c0_i32_0 = arith.constant 0 : i32
    %c0_i32_1 = arith.constant 0 : i32
    return %c0_i32, %c0_i32_0 : i32, i32
  }
  func.func @transform_5(%arg0: i32) -> (i32, i32) {
    %c0_i32 = arith.constant 0 : i32
    %c0_i32_0 = arith.constant 0 : i32
    %c0_i32_1 = arith.constant 0 : i32
    return %c0_i32, %c0_i32_0 : i32, i32
  }
  func.func @transform_6(%arg0: i32) -> (i32, i32) {
    %c0_i32 = arith.constant 0 : i32
    %c0_i32_0 = arith.constant 0 : i32
    %c0_i32_1 = arith.constant 0 : i32
    return %c0_i32, %c0_i32_0 : i32, i32
  }
  func.func @transform_7(%arg0: i32) -> (i32, i32) {
    %c0_i32 = arith.constant 0 : i32
    %c0_i32_0 = arith.constant 0 : i32
    return %arg0, %c0_i32 : i32, i32
  }
}

</mosaic_0001>

<llo_original>
// kernel: dqn_forward.1
$region0: #{dqn_forward.1}
  #allocation0 [shape = 'u32[]', space=smem, size = 0x4, offset = 0x4, fixed_abs, tag = 'smem constant byte address 0x4 - core index']
  #allocation1 [shape = 'u32[144,128]{1,0:T(1,128)}', space=vmem, size = 0x12000, scoped, tag = 'internal scratch']
  %s0 = inlined_call_operand.vmem [shape: f32[8,14], index: 0, kind: input, shape index: {}]
  %s1 = inlined_call_operand.vmem [shape: f32[14,32], index: 1, kind: input, shape index: {}]
  %s2 = inlined_call_operand.vmem [shape: f32[1,32], index: 2, kind: input, shape index: {}]
  %s3 = inlined_call_operand.vmem [shape: f32[32,32], index: 3, kind: input, shape index: {}]
  %s4 = inlined_call_operand.vmem [shape: f32[1,32], index: 4, kind: input, shape index: {}]
  %s5 = inlined_call_operand.vmem [shape: f32[32,10], index: 5, kind: input, shape index: {}]
  %s6 = inlined_call_operand.vmem [shape: f32[1,10], index: 6, kind: input, shape index: {}]
  %s7 = inlined_call_operand.vmem [shape: f32[8,10], index: 7, kind: output, shape index: {}]
  %s8 = sld [smem:[#allocation0]]
  $region38: #{dqn_forward.1} parent=0
    _
  %s10 = ssub.s32 1, %s8
  %s11 = scalar_select 0, %s10, %s8
  // Predicated region
  $region2: #{dqn_forward.1} parent=0 // pred_check
    _
  $region3: #{dqn_forward.1} parent=0 // pred_check_branch
    %13 = sbr.rel (0) target = $region5
  $region4: #{dqn_forward.1} parent=0 // pred_region
    _
  $region5: #{dqn_forward.1} parent=0 // pred_fallthru
    _
  // Predicated region
  $region6: #{dqn_forward.1} parent=0 // pred_check
    _
  $region7: #{dqn_forward.1} parent=0 // pred_check_branch
    %15 = sbr.rel (0) target = $region9
  $region8: #{dqn_forward.1} parent=0 // pred_region
    _
  $region9: #{dqn_forward.1} parent=0 // pred_fallthru
    _
  // Predicated region
  $region10: #{dqn_forward.1} parent=0 // pred_check
    _
  $region11: #{dqn_forward.1} parent=0 // pred_check_branch
    %17 = sbr.rel (0) target = $region13
  $region12: #{dqn_forward.1} parent=0 // pred_region
    _
  $region13: #{dqn_forward.1} parent=0 // pred_fallthru
    _
  // Predicated region
  $region14: #{dqn_forward.1} parent=0 // pred_check
    _
  $region15: #{dqn_forward.1} parent=0 // pred_check_branch
    %19 = sbr.rel (0) target = $region17
  $region16: #{dqn_forward.1} parent=0 // pred_region
    _
  $region17: #{dqn_forward.1} parent=0 // pred_fallthru
    _
  // Predicated region
  $region18: #{dqn_forward.1} parent=0 // pred_check
    _
  $region19: #{dqn_forward.1} parent=0 // pred_check_branch
    %21 = sbr.rel (0) target = $region21
  $region20: #{dqn_forward.1} parent=0 // pred_region
    _
  $region21: #{dqn_forward.1} parent=0 // pred_fallthru
    _
  // Predicated region
  $region22: #{dqn_forward.1} parent=0 // pred_check
    _
  $region23: #{dqn_forward.1} parent=0 // pred_check_branch
    %23 = sbr.rel (0) target = $region25
  $region24: #{dqn_forward.1} parent=0 // pred_region
    _
  $region25: #{dqn_forward.1} parent=0 // pred_fallthru
    _
  // Predicated region
  $region26: #{dqn_forward.1} parent=0 // pred_check
    _
  $region27: #{dqn_forward.1} parent=0 // pred_check_branch
    %25 = sbr.rel (0) target = $region29
  $region28: #{dqn_forward.1} parent=0 // pred_region
    _
  $region29: #{dqn_forward.1} parent=0 // pred_fallthru
    _
  %v26 = vld [vmem:[%s0] sm:$0xff]
  %v27 = vld [vmem:[%s1] sm:$0xff]
  %v28 = vld [vmem:[%s1 + $0x8] sm:$0x3f]
  %v29 = vld [vmem:[%s2] sm:$0x1]
  %v31 = vlaneseq
  %v32 = vshrl.u32 %v31, 7
  %v33 = vsub.s32 0, %v32
  %v34 = vrot.slane %v29, %v33
  %vm36 = vcmask 113664
  %v38 = vsel %vm36, %v26, 0
  %vm40 = vcmask 1045504
  %v42 = vsel %vm40, %v28, 0
  %44 = vmatprep.subr.mxu0 0.0
  %45 = vmatpush1.msra.mxu0 0.0
  %46 = vmatprep.subr.mxu0 0.0
  %47 = vmatpush1.msra.mxu0 0.0
  %48 = vmatprep.subr.mxu0 0.0
  %49 = vmatpush1.msra.mxu0 0.0
  %50 = vmatprep.subr.mxu0 0.0
  %51 = vmatpush1.msra.mxu0 0.0
  %52 = vmatprep.subr.mxu0 0.0
  %53 = vmatpush1.msra.mxu0 0.0
  %54 = vmatprep.subr.mxu0 0.0
  %55 = vmatpush1.msra.mxu0 0.0
  %56 = vmatprep.subr.mxu0 0.0
  %57 = vmatpush1.msra.mxu0 0.0
  %58 = vmatprep.subr.mxu0 0.0
  %59 = vmatpush1.msra.mxu0 0.0
  %60 = vmatprep.subr.mxu0 0.0
  %61 = vmatpush1.msra.mxu0 0.0
  %62 = vmatprep.subr.mxu0 0.0
  %63 = vmatpush1.msra.mxu0 0.0
  %64 = vmatprep.subr.mxu0 0.0
  %65 = vmatpush1.msra.mxu0 0.0
  %66 = vmatprep.subr.mxu0 0.0
  %67 = vmatpush1.msra.mxu0 0.0
  %68 = vmatprep.subr.mxu0 0.0
  %69 = vmatpush1.msra.mxu0 0.0
  %70 = vmatprep.subr.mxu0 0.0
  %71 = vmatpush1.msra.mxu0 0.0
  %72 = vmatprep.subr.mxu0 0.0
  %73 = vmatpush1.msra.mxu0 %v42
  %74 = vmatprep.subr.mxu0 0.0
  %75 = vmatpush1.msra.mxu0 %v27
  %76 = vmatprep.subr.mxu0 0.0
  %77 = vmatpush2.msra.mxu0 0.0
  %78 = vmatprep.subr.mxu0 0.0
  %79 = vmatpush2.msra.mxu0 0.0
  %80 = vmatprep.subr.mxu0 0.0
  %81 = vmatpush2.msra.mxu0 0.0
  %82 = vmatprep.subr.mxu0 0.0
  %83 = vmatpush2.msra.mxu0 0.0
  %84 = vmatprep.subr.mxu0 0.0
  %85 = vmatpush2.msra.mxu0 0.0
  %86 = vmatprep.subr.mxu0 0.0
  %87 = vmatpush2.msra.mxu0 0.0
  %88 = vmatprep.subr.mxu0 0.0
  %89 = vmatpush2.msra.mxu0 0.0
  %90 = vmatprep.subr.mxu0 0.0
  %91 = vmatpush2.msra.mxu0 0.0
  %92 = vmatprep.subr.mxu0 0.0
  %93 = vmatpush2.msra.mxu0 0.0
  %94 = vmatprep.subr.mxu0 0.0
  %95 = vmatpush2.msra.mxu0 0.0
  %96 = vmatprep.subr.mxu0 0.0
  %97 = vmatpush2.msra.mxu0 0.0
  %98 = vmatprep.subr.mxu0 0.0
  %99 = vmatpush2.msra.mxu0 0.0
  %100 = vmatprep.subr.mxu0 0.0
  %101 = vmatpush2.msra.mxu0 0.0
  %102 = vmatprep.subr.mxu0 0.0
  %103 = vmatpush2.msra.mxu0 0.0
  %104 = vmatprep.subr.mxu0 0.0
  %105 = vmatpush2.msra.mxu0 0.0
  %106 = vmatprep.subr.mxu0 0.0
  %107 = vmatpush2.msra.mxu0 0.0
  %108 = vmatprep.mubr.f32.mxu0 0.0
  %109 = vmatmul.mubr.f32.gmra.mxu0 %v38
  %v110 = vpop.f32.mrf.mxu0
  %v111 = vadd.f32 %v34, %v110
  %v112 = vpop.f32.mrf.mxu0
  %113 = vdwg.mxu0
  %v114 = vmax.f32 %v111, 0.0
  %v115 = vld [vmem:[%s3] sm:$0xff]
  %v116 = vld [vmem:[%s3 + $0x8] sm:$0xff]
  %v117 = vld [vmem:[%s3 + $0x10] sm:$0xff]
  %v118 = vld [vmem:[%s3 + $0x18] sm:$0xff]
  %v119 = vld [vmem:[%s4] sm:$0x1]
  %v121 = vlaneseq
  %v122 = vshrl.u32 %v121, 7
  %v123 = vsub.s32 0, %v122
  %v124 = vrot.slane %v119, %v123
  %vm126 = vcmask 261120
  %v128 = vsel %vm126, %v114, 0
  %130 = vmatprep.subr.mxu0 0.0
  %131 = vmatpush1.msra.mxu0 0.0
  %132 = vmatprep.subr.mxu0 0.0
  %133 = vmatpush1.msra.mxu0 0.0
  %134 = vmatprep.subr.mxu0 0.0
  %135 = vmatpush1.msra.mxu0 0.0
  %136 = vmatprep.subr.mxu0 0.0
  %137 = vmatpush1.msra.mxu0 0.0
  %138 = vmatprep.subr.mxu0 0.0
  %139 = vmatpush1.msra.mxu0 0.0
  %140 = vmatprep.subr.mxu0 0.0
  %141 = vmatpush1.msra.mxu0 0.0
  %142 = vmatprep.subr.mxu0 0.0
  %143 = vmatpush1.msra.mxu0 0.0
  %144 = vmatprep.subr.mxu0 0.0
  %145 = vmatpush1.msra.mxu0 0.0
  %146 = vmatprep.subr.mxu0 0.0
  %147 = vmatpush1.msra.mxu0 0.0
  %148 = vmatprep.subr.mxu0 0.0
  %149 = vmatpush1.msra.mxu0 0.0
  %150 = vmatprep.subr.mxu0 0.0
  %151 = vmatpush1.msra.mxu0 0.0
  %152 = vmatprep.subr.mxu0 0.0
  %153 = vmatpush1.msra.mxu0 0.0
  %154 = vmatprep.subr.mxu0 0.0
  %155 = vmatpush1.msra.mxu0 %v118
  %156 = vmatprep.subr.mxu0 0.0
  %157 = vmatpush1.msra.mxu0 %v117
  %158 = vmatprep.subr.mxu0 0.0
  %159 = vmatpush1.msra.mxu0 %v116
  %160 = vmatprep.subr.mxu0 0.0
  %161 = vmatpush1.msra.mxu0 %v115
  %162 = vmatprep.subr.mxu0 0.0
  %163 = vmatpush2.msra.mxu0 0.0
  %164 = vmatprep.subr.mxu0 0.0
  %165 = vmatpush2.msra.mxu0 0.0
  %166 = vmatprep.subr.mxu0 0.0
  %167 = vmatpush2.msra.mxu0 0.0
  %168 = vmatprep.subr.mxu0 0.0
  %169 = vmatpush2.msra.mxu0 0.0
  %170 = vmatprep.subr.mxu0 0.0
  %171 = vmatpush2.msra.mxu0 0.0
  %172 = vmatprep.subr.mxu0 0.0
  %173 = vmatpush2.msra.mxu0 0.0
  %174 = vmatprep.subr.mxu0 0.0
  %175 = vmatpush2.msra.mxu0 0.0
  %176 = vmatprep.subr.mxu0 0.0
  %177 = vmatpush2.msra.mxu0 0.0
  %178 = vmatprep.subr.mxu0 0.0
  %179 = vmatpush2.msra.mxu0 0.0
  %180 = vmatprep.subr.mxu0 0.0
  %181 = vmatpush2.msra.mxu0 0.0
  %182 = vmatprep.subr.mxu0 0.0
  %183 = vmatpush2.msra.mxu0 0.0
  %184 = vmatprep.subr.mxu0 0.0
  %185 = vmatpush2.msra.mxu0 0.0
  %186 = vmatprep.subr.mxu0 0.0
  %187 = vmatpush2.msra.mxu0 0.0
  %188 = vmatprep.subr.mxu0 0.0
  %189 = vmatpush2.msra.mxu0 0.0
  %190 = vmatprep.subr.mxu0 0.0
  %191 = vmatpush2.msra.mxu0 0.0
  %192 = vmatprep.subr.mxu0 0.0
  %193 = vmatpush2.msra.mxu0 0.0
  %194 = vmatprep.mubr.f32.mxu0 0.0
  %195 = vmatmul.mubr.f32.gmra.mxu0 %v128
  %v196 = vpop.f32.mrf.mxu0
  %v197 = vadd.f32 %v124, %v196
  %v198 = vpop.f32.mrf.mxu0
  %199 = vdwg.mxu0
  %v200 = vmax.f32 %v197, 0.0
  %v201 = vld [vmem:[%s5] sm:$0xff]
  %v202 = vld [vmem:[%s5 + $0x8] sm:$0xff]
  %v203 = vld [vmem:[%s5 + $0x10] sm:$0xff]
  %v204 = vld [vmem:[%s5 + $0x18] sm:$0xff]
  %v205 = vld [vmem:[%s6] sm:$0x1]
  %v207 = vlaneseq
  %v208 = vshrl.u32 %v207, 7
  %v209 = vsub.s32 0, %v208
  %v210 = vrot.slane %v205, %v209
  %v213 = vsel %vm126, %v200, 0
  %215 = vmatprep.subr.mxu0 0.0
  %216 = vmatpush1.msra.mxu0 0.0
  %217 = vmatprep.subr.mxu0 0.0
  %218 = vmatpush1.msra.mxu0 0.0
  %219 = vmatprep.subr.mxu0 0.0
  %220 = vmatpush1.msra.mxu0 0.0
  %221 = vmatprep.subr.mxu0 0.0
  %222 = vmatpush1.msra.mxu0 0.0
  %223 = vmatprep.subr.mxu0 0.0
  %224 = vmatpush1.msra.mxu0 0.0
  %225 = vmatprep.subr.mxu0 0.0
  %226 = vmatpush1.msra.mxu0 0.0
  %227 = vmatprep.subr.mxu0 0.0
  %228 = vmatpush1.msra.mxu0 0.0
  %229 = vmatprep.subr.mxu0 0.0
  %230 = vmatpush1.msra.mxu0 0.0
  %231 = vmatprep.subr.mxu0 0.0
  %232 = vmatpush1.msra.mxu0 0.0
  %233 = vmatprep.subr.mxu0 0.0
  %234 = vmatpush1.msra.mxu0 0.0
  %235 = vmatprep.subr.mxu0 0.0
  %236 = vmatpush1.msra.mxu0 0.0
  %237 = vmatprep.subr.mxu0 0.0
  %238 = vmatpush1.msra.mxu0 0.0
  %239 = vmatprep.subr.mxu0 0.0
  %240 = vmatpush1.msra.mxu0 %v204
  %241 = vmatprep.subr.mxu0 0.0
  %242 = vmatpush1.msra.mxu0 %v203
  %243 = vmatprep.subr.mxu0 0.0
  %244 = vmatpush1.msra.mxu0 %v202
  %245 = vmatprep.subr.mxu0 0.0
  %246 = vmatpush1.msra.mxu0 %v201
  %247 = vmatprep.subr.mxu0 0.0
  %248 = vmatpush2.msra.mxu0 0.0
  %249 = vmatprep.subr.mxu0 0.0
  %250 = vmatpush2.msra.mxu0 0.0
  %251 = vmatprep.subr.mxu0 0.0
  %252 = vmatpush2.msra.mxu0 0.0
  %253 = vmatprep.subr.mxu0 0.0
  %254 = vmatpush2.msra.mxu0 0.0
  %255 = vmatprep.subr.mxu0 0.0
  %256 = vmatpush2.msra.mxu0 0.0
  %257 = vmatprep.subr.mxu0 0.0
  %258 = vmatpush2.msra.mxu0 0.0
  %259 = vmatprep.subr.mxu0 0.0
  %260 = vmatpush2.msra.mxu0 0.0
  %261 = vmatprep.subr.mxu0 0.0
  %262 = vmatpush2.msra.mxu0 0.0
  %263 = vmatprep.subr.mxu0 0.0
  %264 = vmatpush2.msra.mxu0 0.0
  %265 = vmatprep.subr.mxu0 0.0
  %266 = vmatpush2.msra.mxu0 0.0
  %267 = vmatprep.subr.mxu0 0.0
  %268 = vmatpush2.msra.mxu0 0.0
  %269 = vmatprep.subr.mxu0 0.0
  %270 = vmatpush2.msra.mxu0 0.0
  %271 = vmatprep.subr.mxu0 0.0
  %272 = vmatpush2.msra.mxu0 0.0
  %273 = vmatprep.subr.mxu0 0.0
  %274 = vmatpush2.msra.mxu0 0.0
  %275 = vmatprep.subr.mxu0 0.0
  %276 = vmatpush2.msra.mxu0 0.0
  %277 = vmatprep.subr.mxu0 0.0
  %278 = vmatpush2.msra.mxu0 0.0
  %279 = vmatprep.mubr.f32.mxu0 0.0
  %280 = vmatmul.mubr.f32.gmra.mxu0 %v213
  %v281 = vpop.f32.mrf.mxu0
  %v282 = vadd.f32 %v210, %v281
  %v283 = vpop.f32.mrf.mxu0
  %284 = vdwg.mxu0
  %vm285 = vcmask 80896
  %286 = vst.msk [vmem:[%s7] sm:$0xff] %vm285, %v282
  // Predicated region
  $region30: #{dqn_forward.1} parent=0 // pred_check
    _
  $region31: #{dqn_forward.1} parent=0 // pred_check_branch
    %288 = sbr.rel (0) target = $region33
  $region32: #{dqn_forward.1} parent=0 // pred_region
    _
  $region33: #{dqn_forward.1} parent=0 // pred_fallthru
    _
  // Predicated region
  $region34: #{dqn_forward.1} parent=0 // pred_check
    _
  $region35: #{dqn_forward.1} parent=0 // pred_check_branch
    %290 = sbr.rel (0) target = $region37
  $region36: #{dqn_forward.1} parent=0 // pred_region
    _
  $region37: #{dqn_forward.1} parent=0 // pred_fallthru
    _

</llo_original>
